<compile_context>
chip_gen: v7x
topology: tpu7x:2x2x1
jax: 0.10.0
libtpu: 0.0.40
codegen_flags: <defaults>
</compile_context>

<pallas_src>
import functools

import jax
import jax.numpy as jnp
from jax.experimental import pallas as pl
from jax.experimental.pallas import tpu as pltpu


def _sigmoid(z):
    # exp lands on the EUP; approx reciprocal also lands on the EUP,
    # keeping VALU slots free for bias adds / casts.
    return pl.reciprocal(1.0 + jnp.exp(-z), approx=True)


def _make_dbn_kernel(num_rbm, row_output):
    """Fused DBN forward kernel.

    Ref order: x, (W_0, b_0), ..., (W_{L-1}, b_{L-1}), clf_w, clf_b, out.
    x / biases / classifier in f32; RBM weights in bf16 (MXU operands).
    """

    def kernel(x_ref, *refs):
        out_ref = refs[-1]
        xf = x_ref[...]                          # f32 (tm, K0)
        a = xf                                   # running f32 activation
        h = xf.astype(jnp.bfloat16)              # bf16 MXU feed (cast in-kernel)
        for i in range(num_rbm):
            w = refs[2 * i][...]                 # bf16 (K_i, N_i)
            b = refs[2 * i + 1][...]             # f32  (1, N_i)
            z = jnp.dot(h, w, preferred_element_type=jnp.float32) + b
            a = _sigmoid(z)                      # f32 (tm, N_i)
            h = a.astype(jnp.bfloat16)
        clf_w = refs[2 * num_rbm][...]           # f32 (1, N_last)
        clf_b = refs[2 * num_rbm + 1][...]       # f32 (1, 1)
        if row_output:
            # Lane-dense (1, tm) store: clf_w . h^T on the MXU -> batch lands
            # on the 128-lane axis, unmasked stores in the epilogue.
            zrow = jax.lax.dot_general(
                clf_w.astype(jnp.bfloat16), h,
                dimension_numbers=(((1,), (1,)), ((), ())),
                preferred_element_type=jnp.float32)
            out_ref[...] = _sigmoid(zrow + clf_b).astype(out_ref.dtype)
        else:
            # (tm, 1) column store: VPU multiply + cross-lane (XLU) reduce.
            z = jnp.sum(a * clf_w, axis=-1, keepdims=True) + clf_b
            out_ref[...] = _sigmoid(z).astype(out_ref.dtype)

    return kernel


def _round_up(x, m):
    return -(-x // m) * m


def _padded_tile_bytes(shape, dtype):
    r, c = shape
    return (_round_up(max(r, 1), 8) * _round_up(max(c, 1), 128)
            * jnp.dtype(dtype).itemsize)


def _tpu_generation():
    try:
        kind = jax.devices()[0].device_kind.lower()
    except Exception:
        return 0
    for g in (7, 6, 5, 4, 3, 2):
        if f"v{g}" in kind:
            return g
    return 0


def _vmem_capacity_bytes(gen):
    try:
        return int(pltpu.get_tpu_info().vmem_capacity_bytes)
    except Exception:
        pass
    if gen in (5, 6):
        return 128 << 20      # v5e / v6e
    return 64 << 20           # v7x or unknown: be conservative


def _tile_candidates(gen):
    if gen == 6:
        # 128 MiB VMEM + 256-wide MXU: chase big tiles to amortize step cost.
        return (1024, 512, 256, 128, 64, 32, 16)
    # v7x: smaller VMEM and 2 TCs want >=2 grid steps; v5e: 128-row MXU
    # cadence, extra-large f32 tiles only add store/spill pressure.
    return (256, 128, 64, 32, 16)


def _pick_batch_tile(B, row_bytes, act_budget, candidates, num_cores):
    for tm in candidates:
        if tm * row_bytes > act_budget:
            continue
        if tm > max(2 * B, 16):
            continue                         # don't pad far past the batch
        n_tiles = -(-B // tm)
        if num_cores > 1 and n_tiles < num_cores and B >= 32:
            continue                         # keep both v7x TensorCores busy
        return tm
    return 16


def _dbn_forward_impl(x, params, use_pipeline_mode):
    rbm, clf = params["rbm"], params["clf"]
    num_rbm = len(rbm)
    B, K0 = x.shape

    gen = _tpu_generation()
    vmem_cap = _vmem_capacity_bytes(gen)
    num_cores = 2 if gen >= 7 else 1
    headroom = 16 << 20

    # Resident weight footprint + per-row activation workspace estimate.
    weight_bytes = 0
    row_bytes = 4 * K0 + 2 * K0 + 8              # x f32 + bf16 cast + out
    for layer in rbm:
        Kl, Nl = layer["W"].shape
        weight_bytes += _padded_tile_bytes((Kl, Nl), jnp.bfloat16)
        weight_bytes += _padded_tile_bytes((1, Nl), jnp.float32)
        row_bytes += 10 * Nl                     # z f32 + a f32 + h bf16
    N_last = rbm[-1]["W"].shape[1] if num_rbm else K0
    weight_bytes += _padded_tile_bytes((1, N_last), jnp.float32)
    weight_bytes += _padded_tile_bytes((1, 1), jnp.float32)
    if not use_pipeline_mode:
        weight_bytes *= 2                        # default double-buffering

    act_budget = vmem_cap - headroom - weight_bytes
    if act_budget < 16 * row_bytes:
        # TODO(synk): for DBNs whose resident weights exceed VMEM (e.g. fits
        # v6e's 128 MiB but not v7x's 64 MiB), stream the large W_i from HBM
        # (memory_space=pl.ANY + manual double-buffered DMA over N-slices);
        # not needed at these sizes.
        act_budget = 16 * row_bytes

    tm = _pick_batch_tile(B, row_bytes, act_budget, _tile_candidates(gen),
                          num_cores)
    B_pad = _round_up(max(B, tm), tm)
    n_tiles = B_pad // tm
    grid = (n_tiles,)

    if B_pad != B:
        x = jnp.pad(x, ((0, B_pad - B), (0, 0)))
    x = x.astype(jnp.float32)

    # Lane-dense (1, tm) output blocks are legal only if tm is lane-aligned or
    # the grid is a single tile; otherwise use the (tm, 1) column layout.
    row_output = (tm % 128 == 0) or (n_tiles == 1)

    single = {"pipeline_mode": pl.Buffered(1)} if use_pipeline_mode else {}
    x_bufs = 3 if (use_pipeline_mode and K0 >= 512 and K0 >= 2 * N_last) else 2
    x_kw = {"pipeline_mode": pl.Buffered(x_bufs)} if use_pipeline_mode else {}

    inputs = [x]
    in_specs = [pl.BlockSpec((tm, K0), lambda i: (i, 0), **x_kw)]
    flops = 0
    transcendentals = 0
    for layer in rbm:
        W, b = layer["W"], layer["h_bias"]
        Kl, Nl = W.shape
        inputs += [W, b]
        in_specs += [pl.BlockSpec((Kl, Nl), lambda i: (0, 0), **single),
                     pl.BlockSpec((1, Nl), lambda i: (0, 0), **single)]
        flops += 2 * B_pad * Kl * Nl
        transcendentals += B_pad * Nl
    inputs += [clf["weight"], clf["bias"]]
    in_specs += [pl.BlockSpec((1, N_last), lambda i: (0, 0), **single),
                 pl.BlockSpec((1, 1), lambda i: (0, 0), **single)]
    flops += 2 * B_pad * N_last
    transcendentals += B_pad

    if row_output:
        out_shape = jax.ShapeDtypeStruct((1, B_pad), jnp.float32)
        out_spec = pl.BlockSpec((1, tm), lambda i: (0, i))
        out_tile = (1, tm)
    else:
        out_shape = jax.ShapeDtypeStruct((B_pad, 1), jnp.float32)
        out_spec = pl.BlockSpec((tm, 1), lambda i: (i, 0))
        out_tile = (tm, 1)

    vmem_est = (weight_bytes
                + x_bufs * _padded_tile_bytes((tm, K0), jnp.float32)
                + 2 * _padded_tile_bytes(out_tile, jnp.float32)
                + tm * row_bytes)
    vmem_limit = int(min(vmem_cap - headroom,
                         max(32 << 20, int(1.5 * vmem_est))))

    bytes_accessed = (sum(int(a.size) * a.dtype.itemsize for a in inputs)
                      + B_pad * 4)

    out = pl.pallas_call(
        _make_dbn_kernel(num_rbm, row_output),
        out_shape=out_shape,
        grid=grid,
        in_specs=in_specs,
        out_specs=out_spec,
        compiler_params=pltpu.CompilerParams(
            dimension_semantics=("parallel",),
            vmem_limit_bytes=vmem_limit,
        ),
        cost_estimate=pl.CostEstimate(
            flops=flops,
            transcendentals=transcendentals,
            bytes_accessed=bytes_accessed,
        ),
    )(*inputs)

    if row_output:
        out = out.reshape(B_pad, 1)
    return out[:B]


@functools.partial(jax.jit, static_argnames=("use_pipeline_mode",))
def _dbn_forward_jit(x, params, use_pipeline_mode):
    return _dbn_forward_impl(x, params, use_pipeline_mode)


def dbn_forward(x, params):
    """Fused DBN forward.  Falls back to default (double-buffered) BlockSpecs
    if this JAX build rejects per-spec pipeline_mode / Buffered(1)."""
    try:
        return _dbn_forward_jit(x, params, use_pipeline_mode=True)
    except Exception:
        return _dbn_forward_jit(x, params, use_pipeline_mode=False)


def init_dbn_params(key, input_dim, hidden_dims):
    """Deterministic parameter init mirroring DBN.__init__ shapes (f32)."""
    dims = [input_dim] + list(hidden_dims)
    params = {"rbm": [], "clf": None}
    for i in range(len(dims) - 1):
        key, sub = jax.random.split(key)
        W = jax.random.normal(sub, (dims[i], dims[i + 1]), jnp.float32) * 0.01
        h_bias = jnp.zeros((dims[i + 1],), jnp.float32)
        params["rbm"].append({"W": W, "h_bias": h_bias})
        # v_bias exists in RBM but is unused in DBN.forward; omitted here.
    key, kw, kb = jax.random.split(key, 3)
    bound = 1.0 / jnp.sqrt(jnp.float32(dims[-1]))
    clf_w = jax.random.uniform(kw, (1, dims[-1]), jnp.float32, -bound, bound)
    clf_b = jax.random.uniform(kb, (1,), jnp.float32, -bound, bound)
    params["clf"] = {"weight": clf_w, "bias": clf_b}
    return params


def prepare_dbn_params(params):
    """One-time prep hoisted out of the forward: bf16 RBM weights for the MXU,
    biases reshaped to (1, N) f32, classifier kept f32."""
    prepared = {"rbm": [], "clf": None}
    for layer in params["rbm"]:
        prepared["rbm"].append({
            "W": layer["W"].astype(jnp.bfloat16),
            "h_bias": layer["h_bias"].reshape(1, -1).astype(jnp.float32),
        })
    clf = params["clf"]
    prepared["clf"] = {
        "weight": clf["weight"].reshape(1, -1).astype(jnp.float32),
        "bias": clf["bias"].reshape(1, 1).astype(jnp.float32),
    }
    return prepared


def dbn_forward_ref(x, params):
    """Pure-JAX f32 reference matching the PyTorch forward."""
    for layer in params["rbm"]:
        x = jax.nn.sigmoid(x @ layer["W"] + layer["h_bias"])
    clf = params["clf"]
    return jax.nn.sigmoid(x @ clf["weight"].T + clf["bias"])


if __name__ == "__main__":
    key = jax.random.PRNGKey(0)
    batch = 8
    input_dim = 32
    hidden_dims = [32, 16]

    kx, kp = jax.random.split(key)
    x = jax.random.normal(kx, (batch, input_dim), jnp.float32)
    params = init_dbn_params(kp, input_dim, hidden_dims)
    prepared = prepare_dbn_params(params)

    out = dbn_forward(x, prepared)
    out = jax.block_until_ready(out)

    ref = dbn_forward_ref(x, params)
    assert out.shape == (batch, 1), out.shape
    # bf16 MXU operands + approx reciprocal -> loose-but-tight tolerance
    # against the f32 reference.
    assert jnp.allclose(out, ref, atol=1e-2, rtol=0.0), (out, ref)

    print("KERNEL_OK")
</pallas_src>

<mosaic_0001>
module attributes {stable_mosaic.version = 11 : i64} {
  func.func @kernel(%arg0: i32, %arg1: memref<16x32xf32, #tpu.memory_space<vmem>>, %arg2: memref<32x32xbf16, #tpu.memory_space<vmem>>, %arg3: memref<1x32xf32, #tpu.memory_space<vmem>>, %arg4: memref<32x16xbf16, #tpu.memory_space<vmem>>, %arg5: memref<1x16xf32, #tpu.memory_space<vmem>>, %arg6: memref<1x16xf32, #tpu.memory_space<vmem>>, %arg7: memref<1x1xf32, #tpu.memory_space<vmem>>, %arg8: memref<1x16xf32, #tpu.memory_space<vmem>>) attributes {dimension_semantics = [#tpu.dimension_semantics<parallel>], iteration_bounds = array<i64: 1>, scalar_prefetch = 0 : i64, scratch_operands = 0 : i64, tpu.core_type = #tpu.core_type<tc>, window_params = [{pipeline_mode = #tpu.pipeline_mode<double_buffered>, transform_indices = @transform_0, window_bounds = array<i64: 16, 32>}, {pipeline_mode = #tpu.pipeline_mode<synchronous>, transform_indices = @transform_1, window_bounds = array<i64: 32, 32>}, {pipeline_mode = #tpu.pipeline_mode<synchronous>, transform_indices = @transform_2, window_bounds = array<i64: 1, 32>}, {pipeline_mode = #tpu.pipeline_mode<synchronous>, transform_indices = @transform_3, window_bounds = array<i64: 32, 16>}, {pipeline_mode = #tpu.pipeline_mode<synchronous>, transform_indices = @transform_4, window_bounds = array<i64: 1, 16>}, {pipeline_mode = #tpu.pipeline_mode<synchronous>, transform_indices = @transform_5, window_bounds = array<i64: 1, 16>}, {pipeline_mode = #tpu.pipeline_mode<synchronous>, transform_indices = @transform_6, window_bounds = array<i64: 1, 1>}, {transform_indices = @transform_7, window_bounds = array<i64: 1, 16>}]} {
    %c0 = arith.constant 0 : index
    %c0_0 = arith.constant 0 : index
    %0 = vector.load %arg1[%c0, %c0_0] : memref<16x32xf32, #tpu.memory_space<vmem>>, vector<16x32xf32>
    %1 = arith.truncf %0 : vector<16x32xf32> to vector<16x32xbf16>
    %c0_1 = arith.constant 0 : index
    %c0_2 = arith.constant 0 : index
    %2 = vector.load %arg2[%c0_1, %c0_2] : memref<32x32xbf16, #tpu.memory_space<vmem>>, vector<32x32xbf16>
    %c0_3 = arith.constant 0 : index
    %c0_4 = arith.constant 0 : index
    %3 = vector.load %arg3[%c0_3, %c0_4] : memref<1x32xf32, #tpu.memory_space<vmem>>, vector<1x32xf32>
    %cst = arith.constant dense<0.000000e+00> : vector<16x32xf32>
    %4 = tpu.matmul %1, %2, %cst {dimension_numbers = #tpu.dot_dimension_numbers<[1], [0], [0], [1], [0, 0, 1, 1], [], []>} : vector<16x32xbf16>, vector<32x32xbf16>, vector<16x32xf32> -> vector<16x32xf32>
    %5 = vector.broadcast %3 : vector<1x32xf32> to vector<16x32xf32>
    %6 = arith.addf %4, %5 : vector<16x32xf32>
    %cst_5 = arith.constant 0.000000e+00 : f32
    %7 = vector.broadcast %cst_5 : f32 to vector<16x32xf32>
    %8 = arith.subf %7, %6 : vector<16x32xf32>
    %9 = math.exp %8 : vector<16x32xf32>
    %cst_6 = arith.constant 1.000000e+00 : f32
    %10 = vector.broadcast %cst_6 : f32 to vector<16x32xf32>
    %11 = arith.addf %10, %9 : vector<16x32xf32>
    %12 = tpu.reciprocal %11 {approx = true} : vector<16x32xf32> -> vector<16x32xf32>
    %13 = arith.truncf %12 : vector<16x32xf32> to vector<16x32xbf16>
    %c0_7 = arith.constant 0 : index
    %c0_8 = arith.constant 0 : index
    %14 = vector.load %arg4[%c0_7, %c0_8] : memref<32x16xbf16, #tpu.memory_space<vmem>>, vector<32x16xbf16>
    %c0_9 = arith.constant 0 : index
    %c0_10 = arith.constant 0 : index
    %15 = vector.load %arg5[%c0_9, %c0_10] : memref<1x16xf32, #tpu.memory_space<vmem>>, vector<1x16xf32>
    %cst_11 = arith.constant dense<0.000000e+00> : vector<16x16xf32>
    %16 = tpu.matmul %13, %14, %cst_11 {dimension_numbers = #tpu.dot_dimension_numbers<[1], [0], [0], [1], [0, 0, 1, 1], [], []>} : vector<16x32xbf16>, vector<32x16xbf16>, vector<16x16xf32> -> vector<16x16xf32>
    %17 = vector.broadcast %15 : vector<1x16xf32> to vector<16x16xf32>
    %18 = arith.addf %16, %17 : vector<16x16xf32>
    %cst_12 = arith.constant 0.000000e+00 : f32
    %19 = vector.broadcast %cst_12 : f32 to vector<16x16xf32>
    %20 = arith.subf %19, %18 : vector<16x16xf32>
    %21 = math.exp %20 : vector<16x16xf32>
    %cst_13 = arith.constant 1.000000e+00 : f32
    %22 = vector.broadcast %cst_13 : f32 to vector<16x16xf32>
    %23 = arith.addf %22, %21 : vector<16x16xf32>
    %24 = tpu.reciprocal %23 {approx = true} : vector<16x16xf32> -> vector<16x16xf32>
    %25 = arith.truncf %24 : vector<16x16xf32> to vector<16x16xbf16>
    %c0_14 = arith.constant 0 : index
    %c0_15 = arith.constant 0 : index
    %26 = vector.load %arg6[%c0_14, %c0_15] : memref<1x16xf32, #tpu.memory_space<vmem>>, vector<1x16xf32>
    %c0_16 = arith.constant 0 : index
    %c0_17 = arith.constant 0 : index
    %27 = vector.load %arg7[%c0_16, %c0_17] : memref<1x1xf32, #tpu.memory_space<vmem>>, vector<1x1xf32>
    %28 = arith.truncf %26 : vector<1x16xf32> to vector<1x16xbf16>
    %cst_18 = arith.constant dense<0.000000e+00> : vector<1x16xf32>
    %29 = tpu.matmul %28, %25, %cst_18 {dimension_numbers = #tpu.dot_dimension_numbers<[1], [1], [0], [0], [0, 0, 1, 0], [], []>} : vector<1x16xbf16>, vector<16x16xbf16>, vector<1x16xf32> -> vector<1x16xf32>
    %30 = vector.broadcast %27 : vector<1x1xf32> to vector<1x16xf32>
    %31 = arith.addf %29, %30 : vector<1x16xf32>
    %cst_19 = arith.constant 0.000000e+00 : f32
    %32 = vector.broadcast %cst_19 : f32 to vector<1x16xf32>
    %33 = arith.subf %32, %31 : vector<1x16xf32>
    %34 = math.exp %33 : vector<1x16xf32>
    %cst_20 = arith.constant 1.000000e+00 : f32
    %35 = vector.broadcast %cst_20 : f32 to vector<1x16xf32>
    %36 = arith.addf %35, %34 : vector<1x16xf32>
    %37 = tpu.reciprocal %36 {approx = true} : vector<1x16xf32> -> vector<1x16xf32>
    %c0_21 = arith.constant 0 : index
    %c0_22 = arith.constant 0 : index
    %38 = vector.load %arg8[%c0_21, %c0_22] : memref<1x16xf32, #tpu.memory_space<vmem>>, vector<1x16xf32>
    tpu.vector_store %arg8[%c0_21, %c0_22], %37 {strides = array<i32>} : memref<1x16xf32, #tpu.memory_space<vmem>>, vector<1x16xf32>,
    return
  }
  func.func @transform_0(%arg0: i32) -> (i32, i32) {
    %c0_i32 = arith.constant 0 : i32
    %c0_i32_0 = arith.constant 0 : i32
    return %arg0, %c0_i32 : i32, i32
  }
  func.func @transform_1(%arg0: i32) -> (i32, i32) {
    %c0_i32 = arith.constant 0 : i32
    %c0_i32_0 = arith.constant 0 : i32
    %c0_i32_1 = arith.constant 0 : i32
    return %c0_i32, %c0_i32_0 : i32, i32
  }
  func.func @transform_2(%arg0: i32) -> (i32, i32) {
    %c0_i32 = arith.constant 0 : i32
    %c0_i32_0 = arith.constant 0 : i32
    %c0_i32_1 = arith.constant 0 : i32
    return %c0_i32, %c0_i32_0 : i32, i32
  }
  func.func @transform_3(%arg0: i32) -> (i32, i32) {
    %c0_i32 = arith.constant 0 : i32
    %c0_i32_0 = arith.constant 0 : i32
    %c0_i32_1 = arith.constant 0 : i32
    return %c0_i32, %c0_i32_0 : i32, i32
  }
  func.func @transform_4(%arg0: i32) -> (i32, i32) {
    %c0_i32 = arith.constant 0 : i32
    %c0_i32_0 = arith.constant 0 : i32
    %c0_i32_1 = arith.constant 0 : i32
    return %c0_i32, %c0_i32_0 : i32, i32
  }
  func.func @transform_5(%arg0: i32) -> (i32, i32) {
    %c0_i32 = arith.constant 0 : i32
    %c0_i32_0 = arith.constant 0 : i32
    %c0_i32_1 = arith.constant 0 : i32
    return %c0_i32, %c0_i32_0 : i32, i32
  }
  func.func @transform_6(%arg0: i32) -> (i32, i32) {
    %c0_i32 = arith.constant 0 : i32
    %c0_i32_0 = arith.constant 0 : i32
    %c0_i32_1 = arith.constant 0 : i32
    return %c0_i32, %c0_i32_0 : i32, i32
  }
  func.func @transform_7(%arg0: i32) -> (i32, i32) {
    %c0_i32 = arith.constant 0 : i32
    %c0_i32_0 = arith.constant 0 : i32
    return %c0_i32, %arg0 : i32, i32
  }
}

module attributes {stable_mosaic.version = 11 : i64} {
  func.func @kernel(%arg0: i32, %arg1: memref<16x32xf32, #tpu.memory_space<vmem>>, %arg2: memref<32x32xbf16, #tpu.memory_space<vmem>>, %arg3: memref<1x32xf32, #tpu.memory_space<vmem>>, %arg4: memref<32x16xbf16, #tpu.memory_space<vmem>>, %arg5: memref<1x16xf32, #tpu.memory_space<vmem>>, %arg6: memref<1x16xf32, #tpu.memory_space<vmem>>, %arg7: memref<1x1xf32, #tpu.memory_space<vmem>>, %arg8: memref<1x16xf32, #tpu.memory_space<vmem>>) attributes {dimension_semantics = [#tpu.dimension_semantics<parallel>], iteration_bounds = array<i64: 1>, scalar_prefetch = 0 : i64, scratch_operands = 0 : i64, tpu.core_type = #tpu.core_type<tc>, window_params = [{transform_indices = @transform_0, window_bounds = array<i64: 16, 32>}, {pipeline_mode = #tpu.pipeline_mode<synchronous>, transform_indices = @transform_1, window_bounds = array<i64: 32, 32>}, {pipeline_mode = #tpu.pipeline_mode<synchronous>, transform_indices = @transform_2, window_bounds = array<i64: 1, 32>}, {pipeline_mode = #tpu.pipeline_mode<synchronous>, transform_indices = @transform_3, window_bounds = array<i64: 32, 16>}, {pipeline_mode = #tpu.pipeline_mode<synchronous>, transform_indices = @transform_4, window_bounds = array<i64: 1, 16>}, {pipeline_mode = #tpu.pipeline_mode<synchronous>, transform_indices = @transform_5, window_bounds = array<i64: 1, 16>}, {pipeline_mode = #tpu.pipeline_mode<synchronous>, transform_indices = @transform_6, window_bounds = array<i64: 1, 1>}, {transform_indices = @transform_7, window_bounds = array<i64: 1, 16>}]} {
    %c0 = arith.constant 0 : index
    %c0_0 = arith.constant 0 : index
    %0 = vector.load %arg1[%c0, %c0_0] : memref<16x32xf32, #tpu.memory_space<vmem>>, vector<16x32xf32>
    %1 = arith.truncf %0 : vector<16x32xf32> to vector<16x32xbf16>
    %c0_1 = arith.constant 0 : index
    %c0_2 = arith.constant 0 : index
    %2 = vector.load %arg2[%c0_1, %c0_2] : memref<32x32xbf16, #tpu.memory_space<vmem>>, vector<32x32xbf16>
    %c0_3 = arith.constant 0 : index
    %c0_4 = arith.constant 0 : index
    %3 = vector.load %arg3[%c0_3, %c0_4] : memref<1x32xf32, #tpu.memory_space<vmem>>, vector<1x32xf32>
    %cst = arith.constant dense<0.000000e+00> : vector<16x32xf32>
    %4 = tpu.matmul %1, %2, %cst {dimension_numbers = #tpu.dot_dimension_numbers<[1], [0], [0], [1], [0, 0, 1, 1], [], []>} : vector<16x32xbf16>, vector<32x32xbf16>, vector<16x32xf32> -> vector<16x32xf32>
    %5 = vector.broadcast %3 : vector<1x32xf32> to vector<16x32xf32>
    %6 = arith.addf %4, %5 : vector<16x32xf32>
    %cst_5 = arith.constant 0.000000e+00 : f32
    %7 = vector.broadcast %cst_5 : f32 to vector<16x32xf32>
    %8 = arith.subf %7, %6 : vector<16x32xf32>
    %9 = math.exp %8 : vector<16x32xf32>
    %cst_6 = arith.constant 1.000000e+00 : f32
    %10 = vector.broadcast %cst_6 : f32 to vector<16x32xf32>
    %11 = arith.addf %10, %9 : vector<16x32xf32>
    %12 = tpu.reciprocal %11 {approx = true} : vector<16x32xf32> -> vector<16x32xf32>
    %13 = arith.truncf %12 : vector<16x32xf32> to vector<16x32xbf16>
    %c0_7 = arith.constant 0 : index
    %c0_8 = arith.constant 0 : index
    %14 = vector.load %arg4[%c0_7, %c0_8] : memref<32x16xbf16, #tpu.memory_space<vmem>>, vector<32x16xbf16>
    %c0_9 = arith.constant 0 : index
    %c0_10 = arith.constant 0 : index
    %15 = vector.load %arg5[%c0_9, %c0_10] : memref<1x16xf32, #tpu.memory_space<vmem>>, vector<1x16xf32>
    %cst_11 = arith.constant dense<0.000000e+00> : vector<16x16xf32>
    %16 = tpu.matmul %13, %14, %cst_11 {dimension_numbers = #tpu.dot_dimension_numbers<[1], [0], [0], [1], [0, 0, 1, 1], [], []>} : vector<16x32xbf16>, vector<32x16xbf16>, vector<16x16xf32> -> vector<16x16xf32>
    %17 = vector.broadcast %15 : vector<1x16xf32> to vector<16x16xf32>
    %18 = arith.addf %16, %17 : vector<16x16xf32>
    %cst_12 = arith.constant 0.000000e+00 : f32
    %19 = vector.broadcast %cst_12 : f32 to vector<16x16xf32>
    %20 = arith.subf %19, %18 : vector<16x16xf32>
    %21 = math.exp %20 : vector<16x16xf32>
    %cst_13 = arith.constant 1.000000e+00 : f32
    %22 = vector.broadcast %cst_13 : f32 to vector<16x16xf32>
    %23 = arith.addf %22, %21 : vector<16x16xf32>
    %24 = tpu.reciprocal %23 {approx = true} : vector<16x16xf32> -> vector<16x16xf32>
    %25 = arith.truncf %24 : vector<16x16xf32> to vector<16x16xbf16>
    %c0_14 = arith.constant 0 : index
    %c0_15 = arith.constant 0 : index
    %26 = vector.load %arg6[%c0_14, %c0_15] : memref<1x16xf32, #tpu.memory_space<vmem>>, vector<1x16xf32>
    %c0_16 = arith.constant 0 : index
    %c0_17 = arith.constant 0 : index
    %27 = vector.load %arg7[%c0_16, %c0_17] : memref<1x1xf32, #tpu.memory_space<vmem>>, vector<1x1xf32>
    %28 = arith.truncf %26 : vector<1x16xf32> to vector<1x16xbf16>
    %cst_18 = arith.constant dense<0.000000e+00> : vector<1x16xf32>
    %29 = tpu.matmul %28, %25, %cst_18 {dimension_numbers = #tpu.dot_dimension_numbers<[1], [1], [0], [0], [0, 0, 1, 0], [], []>} : vector<1x16xbf16>, vector<16x16xbf16>, vector<1x16xf32> -> vector<1x16xf32>
    %30 = vector.broadcast %27 : vector<1x1xf32> to vector<1x16xf32>
    %31 = arith.addf %29, %30 : vector<1x16xf32>
    %cst_19 = arith.constant 0.000000e+00 : f32
    %32 = vector.broadcast %cst_19 : f32 to vector<1x16xf32>
    %33 = arith.subf %32, %31 : vector<1x16xf32>
    %34 = math.exp %33 : vector<1x16xf32>
    %cst_20 = arith.constant 1.000000e+00 : f32
    %35 = vector.broadcast %cst_20 : f32 to vector<1x16xf32>
    %36 = arith.addf %35, %34 : vector<1x16xf32>
    %37 = tpu.reciprocal %36 {approx = true} : vector<1x16xf32> -> vector<1x16xf32>
    %c0_21 = arith.constant 0 : index
    %c0_22 = arith.constant 0 : index
    %38 = vector.load %arg8[%c0_21, %c0_22] : memref<1x16xf32, #tpu.memory_space<vmem>>, vector<1x16xf32>
    tpu.vector_store %arg8[%c0_21, %c0_22], %37 {strides = array<i32>} : memref<1x16xf32, #tpu.memory_space<vmem>>, vector<1x16xf32>,
    return
  }
  func.func @transform_0(%arg0: i32) -> (i32, i32) {
    %c0_i32 = arith.constant 0 : i32
    %c0_i32_0 = arith.constant 0 : i32
    return %arg0, %c0_i32 : i32, i32
  }
  func.func @transform_1(%arg0: i32) -> (i32, i32) {
    %c0_i32 = arith.constant 0 : i32
    %c0_i32_0 = arith.constant 0 : i32
    %c0_i32_1 = arith.constant 0 : i32
    return %c0_i32, %c0_i32_0 : i32, i32
  }
  func.func @transform_2(%arg0: i32) -> (i32, i32) {
    %c0_i32 = arith.constant 0 : i32
    %c0_i32_0 = arith.constant 0 : i32
    %c0_i32_1 = arith.constant 0 : i32
    return %c0_i32, %c0_i32_0 : i32, i32
  }
  func.func @transform_3(%arg0: i32) -> (i32, i32) {
    %c0_i32 = arith.constant 0 : i32
    %c0_i32_0 = arith.constant 0 : i32
    %c0_i32_1 = arith.constant 0 : i32
    return %c0_i32, %c0_i32_0 : i32, i32
  }
  func.func @transform_4(%arg0: i32) -> (i32, i32) {
    %c0_i32 = arith.constant 0 : i32
    %c0_i32_0 = arith.constant 0 : i32
    %c0_i32_1 = arith.constant 0 : i32
    return %c0_i32, %c0_i32_0 : i32, i32
  }
  func.func @transform_5(%arg0: i32) -> (i32, i32) {
    %c0_i32 = arith.constant 0 : i32
    %c0_i32_0 = arith.constant 0 : i32
    %c0_i32_1 = arith.constant 0 : i32
    return %c0_i32, %c0_i32_0 : i32, i32
  }
  func.func @transform_6(%arg0: i32) -> (i32, i32) {
    %c0_i32 = arith.constant 0 : i32
    %c0_i32_0 = arith.constant 0 : i32
    %c0_i32_1 = arith.constant 0 : i32
    return %c0_i32, %c0_i32_0 : i32, i32
  }
  func.func @transform_7(%arg0: i32) -> (i32, i32) {
    %c0_i32 = arith.constant 0 : i32
    %c0_i32_0 = arith.constant 0 : i32
    return %c0_i32, %arg0 : i32, i32
  }
}

</mosaic_0001>

<llo_original>
// kernel: _dbn_forward_jit.1
$region0: #{_dbn_forward_jit.1}
  #allocation0 [shape = 'u32[]', space=smem, size = 0x4, offset = 0x4, fixed_abs, tag = 'smem constant byte address 0x4 - core index']
  #allocation1 [shape = 'u32[144,128]{1,0:T(1,128)}', space=vmem, size = 0x12000, scoped, tag = 'internal scratch']
  #allocation2 [shape = 'f32[1,1]{1,0:T(1,128)S(1)}', space=vmem, size = 0x200, scoped, tag = 'scoped memory for _dbn_forward_jit.1']
  %s0 = inlined_call_operand.vmem [shape: f32[16,32], index: 0, kind: input, shape index: {}]
  %s1 = inlined_call_operand.vmem [shape: bf16[32,32], index: 1, kind: input, shape index: {}]
  %s2 = inlined_call_operand.vmem [shape: f32[1,32], index: 2, kind: input, shape index: {}]
  %s3 = inlined_call_operand.vmem [shape: bf16[32,16], index: 3, kind: input, shape index: {}]
  %s4 = inlined_call_operand.vmem [shape: f32[1,16], index: 4, kind: input, shape index: {}]
  %s5 = inlined_call_operand.vmem [shape: f32[1,16], index: 5, kind: input, shape index: {}]
  %s6 = inlined_call_operand.<no memory space> [shape: f32[1,1], index: 6, kind: input, shape index: {}]
  %s7 = inlined_call_operand.vmem [shape: f32[1,16], index: 7, kind: output, shape index: {}]
  %s8 = sld [smem:[#allocation0]]
  $region38: #{_dbn_forward_jit.1} parent=0
    _
  %s10 = ssub.s32 1, %s8
  %s11 = scalar_select 0, %s10, %s8
  %v12 = vstv %s6
  %13 = vst [vmem:[#allocation2] sm:$0x1] %v12
  // Predicated region
  $region2: #{_dbn_forward_jit.1} parent=0 // pred_check
    _
  $region3: #{_dbn_forward_jit.1} parent=0 // pred_check_branch
    %15 = sbr.rel (0) target = $region5
  $region4: #{_dbn_forward_jit.1} parent=0 // pred_region
    _
  $region5: #{_dbn_forward_jit.1} parent=0 // pred_fallthru
    _
  // Predicated region
  $region6: #{_dbn_forward_jit.1} parent=0 // pred_check
    _
  $region7: #{_dbn_forward_jit.1} parent=0 // pred_check_branch
    %17 = sbr.rel (0) target = $region9
  $region8: #{_dbn_forward_jit.1} parent=0 // pred_region
    _
  $region9: #{_dbn_forward_jit.1} parent=0 // pred_fallthru
    _
  // Predicated region
  $region10: #{_dbn_forward_jit.1} parent=0 // pred_check
    _
  $region11: #{_dbn_forward_jit.1} parent=0 // pred_check_branch
    %19 = sbr.rel (0) target = $region13
  $region12: #{_dbn_forward_jit.1} parent=0 // pred_region
    _
  $region13: #{_dbn_forward_jit.1} parent=0 // pred_fallthru
    _
  // Predicated region
  $region14: #{_dbn_forward_jit.1} parent=0 // pred_check
    _
  $region15: #{_dbn_forward_jit.1} parent=0 // pred_check_branch
    %21 = sbr.rel (0) target = $region17
  $region16: #{_dbn_forward_jit.1} parent=0 // pred_region
    _
  $region17: #{_dbn_forward_jit.1} parent=0 // pred_fallthru
    _
  // Predicated region
  $region18: #{_dbn_forward_jit.1} parent=0 // pred_check
    _
  $region19: #{_dbn_forward_jit.1} parent=0 // pred_check_branch
    %23 = sbr.rel (0) target = $region21
  $region20: #{_dbn_forward_jit.1} parent=0 // pred_region
    _
  $region21: #{_dbn_forward_jit.1} parent=0 // pred_fallthru
    _
  // Predicated region
  $region22: #{_dbn_forward_jit.1} parent=0 // pred_check
    _
  $region23: #{_dbn_forward_jit.1} parent=0 // pred_check_branch
    %25 = sbr.rel (0) target = $region25
  $region24: #{_dbn_forward_jit.1} parent=0 // pred_region
    _
  $region25: #{_dbn_forward_jit.1} parent=0 // pred_fallthru
    _
  // Predicated region
  $region26: #{_dbn_forward_jit.1} parent=0 // pred_check
    _
  $region27: #{_dbn_forward_jit.1} parent=0 // pred_check_branch
    %27 = sbr.rel (0) target = $region29
  $region28: #{_dbn_forward_jit.1} parent=0 // pred_region
    _
  $region29: #{_dbn_forward_jit.1} parent=0 // pred_fallthru
    _
  %v29 = vld [vmem:[%s0] sm:$0xff]
  %v30 = vld [vmem:[%s0 + $0x8] sm:$0xff]
  %v31 = vpack.c.bf16 %v30, %v29
  %v32 = vld [vmem:[%s1] sm:$0xf]
  %v33 = vld [vmem:[%s1 + $0x4] sm:$0xf]
  %v34 = vld [vmem:[%s1 + $0x8] sm:$0xf]
  %v35 = vld [vmem:[%s1 + $0xc] sm:$0xf]
  %v36 = vld [vmem:[%s2] sm:$0x1]
  %v38 = vlaneseq
  %v39 = vshrl.u32 %v38, 7
  %v40 = vsub.s32 0, %v39
  %v41 = vrot.slane %v36, %v40
  %v47 = vunpack.c.l.b16 %v32
  %v48 = vunpack.c.l.b16 %v33
  %v49 = vunpack.c.l.b16 %v34
  %v50 = vunpack.c.l.b16 %v35
  %v51 = vpack.c.b16 %v48, %v47
  %v52 = vpack.c.b16 %v50, %v49
  %vm55 = vcmask 261120
  %v57 = vsel %vm55, %v31, 0
  %59 = vmatprep.subr.bf16.mxu0 0
  %60 = vmatpush1.bf16.msra.mxu0 %v51
  %61 = vmatprep.subr.bf16.mxu0 0
  %62 = vmatpush1.bf16.msra.mxu0 %v52
  %63 = vmatprep.subr.bf16.mxu0 0
  %64 = vmatpush1.bf16.msra.mxu0 0
  %65 = vmatprep.subr.bf16.mxu0 0
  %66 = vmatpush1.bf16.msra.mxu0 0
  %67 = vmatprep.subr.bf16.mxu0 0
  %68 = vmatpush1.bf16.msra.mxu0 0
  %69 = vmatprep.subr.bf16.mxu0 0
  %70 = vmatpush1.bf16.msra.mxu0 0
  %71 = vmatprep.subr.bf16.mxu0 0
  %72 = vmatpush1.bf16.msra.mxu0 0
  %73 = vmatprep.subr.bf16.mxu0 0
  %74 = vmatpush1.bf16.msra.mxu0 0
  %75 = vmatprep.subr.bf16.mxu0 0
  %76 = vmatpush1.bf16.msra.mxu0 0
  %77 = vmatprep.subr.bf16.mxu0 0
  %78 = vmatpush1.bf16.msra.mxu0 0
  %79 = vmatprep.subr.bf16.mxu0 0
  %80 = vmatpush1.bf16.msra.mxu0 0
  %81 = vmatprep.subr.bf16.mxu0 0
  %82 = vmatpush1.bf16.msra.mxu0 0
  %83 = vmatprep.subr.bf16.mxu0 0
  %84 = vmatpush1.bf16.msra.mxu0 0
  %85 = vmatprep.subr.bf16.mxu0 0
  %86 = vmatpush1.bf16.msra.mxu0 0
  %87 = vmatprep.subr.bf16.mxu0 0
  %88 = vmatpush1.bf16.msra.mxu0 0
  %89 = vmatprep.subr.bf16.mxu0 0
  %90 = vmatpush1.bf16.msra.mxu0 0
  %91 = vmatprep.mubr.bf16.mxu0 0
  %92 = vmatmul.mubr.bf16.gmra.mrb[0].mxu0 %v57
  %v93 = vpop.f32.mrb[0].mxu0
  %v94 = vadd.f32 %v41, %v93
  %v95 = vpop.f32.mrb[0].mxu0
  %v96 = vpop.f32.mrb[0].mxu0
  %v97 = vadd.f32 %v41, %v96
  %v98 = vpop.f32.mrb[0].mxu0
  %99 = vdwg.mxu0
  %v100 = vsub.f32 0.0, %v94
  %v101 = vsub.f32 0.0, %v97
  %v102 = vmul.f32 %v100, 1.442695
  %v103 = vpow.pop %v102
  %v104 = vmul.f32 %v101, 1.442695
  %v105 = vpow.pop %v104
  %v106 = vadd.f32 %v103, 1.0
  %v107 = vadd.f32 %v105, 1.0
  %v108 = vrcp.pop %v106
  %v109 = vrcp.pop %v107
  %v110 = vpack.c.bf16 %v109, %v108
  %v111 = vld [vmem:[%s3] sm:$0xf]
  %v112 = vld [vmem:[%s3 + $0x4] sm:$0xf]
  %v113 = vld [vmem:[%s3 + $0x8] sm:$0xf]
  %v114 = vld [vmem:[%s3 + $0xc] sm:$0xf]
  %v115 = vld [vmem:[%s4] sm:$0x1]
  %v117 = vlaneseq
  %v118 = vshrl.u32 %v117, 7
  %v119 = vsub.s32 0, %v118
  %v120 = vrot.slane %v115, %v119
  %v126 = vunpack.c.l.b16 %v111
  %v127 = vunpack.c.l.b16 %v112
  %v128 = vunpack.c.l.b16 %v113
  %v129 = vunpack.c.l.b16 %v114
  %v130 = vpack.c.b16 %v127, %v126
  %v131 = vpack.c.b16 %v129, %v128
  %v135 = vsel %vm55, %v110, 0
  %137 = vmatprep.subr.bf16.mxu0 0
  %138 = vmatpush1.bf16.msra.mxu0 %v130
  %139 = vmatprep.subr.bf16.mxu0 0
  %140 = vmatpush1.bf16.msra.mxu0 %v131
  %141 = vmatprep.subr.bf16.mxu0 0
  %142 = vmatpush1.bf16.msra.mxu0 0
  %143 = vmatprep.subr.bf16.mxu0 0
  %144 = vmatpush1.bf16.msra.mxu0 0
  %145 = vmatprep.subr.bf16.mxu0 0
  %146 = vmatpush1.bf16.msra.mxu0 0
  %147 = vmatprep.subr.bf16.mxu0 0
  %148 = vmatpush1.bf16.msra.mxu0 0
  %149 = vmatprep.subr.bf16.mxu0 0
  %150 = vmatpush1.bf16.msra.mxu0 0
  %151 = vmatprep.subr.bf16.mxu0 0
  %152 = vmatpush1.bf16.msra.mxu0 0
  %153 = vmatprep.subr.bf16.mxu0 0
  %154 = vmatpush1.bf16.msra.mxu0 0
  %155 = vmatprep.subr.bf16.mxu0 0
  %156 = vmatpush1.bf16.msra.mxu0 0
  %157 = vmatprep.subr.bf16.mxu0 0
  %158 = vmatpush1.bf16.msra.mxu0 0
  %159 = vmatprep.subr.bf16.mxu0 0
  %160 = vmatpush1.bf16.msra.mxu0 0
  %161 = vmatprep.subr.bf16.mxu0 0
  %162 = vmatpush1.bf16.msra.mxu0 0
  %163 = vmatprep.subr.bf16.mxu0 0
  %164 = vmatpush1.bf16.msra.mxu0 0
  %165 = vmatprep.subr.bf16.mxu0 0
  %166 = vmatpush1.bf16.msra.mxu0 0
  %167 = vmatprep.subr.bf16.mxu0 0
  %168 = vmatpush1.bf16.msra.mxu0 0
  %169 = vmatprep.mubr.bf16.mxu0 0
  %170 = vmatmul.mubr.bf16.gmra.mrb[0].mxu0 %v135
  %v171 = vpop.f32.mrb[0].mxu0
  %v172 = vadd.f32 %v120, %v171
  %v173 = vpop.f32.mrb[0].mxu0
  %v174 = vpop.f32.mrb[0].mxu0
  %v175 = vadd.f32 %v120, %v174
  %v176 = vpop.f32.mrb[0].mxu0
  %177 = vdwg.mxu0
  %v178 = vsub.f32 0.0, %v172
  %v179 = vsub.f32 0.0, %v175
  %v180 = vmul.f32 %v178, 1.442695
  %v181 = vpow.pop %v180
  %v182 = vmul.f32 %v179, 1.442695
  %v183 = vpow.pop %v182
  %v184 = vadd.f32 %v181, 1.0
  %v185 = vadd.f32 %v183, 1.0
  %v186 = vrcp.pop %v184
  %v187 = vrcp.pop %v185
  %v188 = vpack.c.bf16 %v187, %v186
  %v189 = vld [vmem:[%s5] sm:$0x1]
  %v190 = vld [vmem:[#allocation2] sm:$0x1]
  %v191 = vpack.c.bf16 %v189, %v189
  %193 = vset.pattern.permute.xlu0 0
  %194 = vperm.xlu0 %193, %v190
  %v195 = vpop.permute.xlu0 %194
  %v197 = vlaneseq
  %v198 = vshrl.u32 %v197, 7
  %v199 = vsub.s32 0, %v198
  %v200 = vrot.slane %v195, %v199
  %vm201 = vcmask 130048
  %v203 = vsel %vm201, %v191, 0
  %v206 = vsel %vm201, %v188, 0
  %208 = vmatprep.subr.bf16.mxu0 0
  %209 = vmatpush1.bf16.xpose.msra.mxu0 %v206
  %210 = vmatprep.subr.bf16.mxu0 0
  %211 = vmatpush1.bf16.xpose.msra.mxu0 0
  %212 = vmatprep.subr.bf16.mxu0 0
  %213 = vmatpush1.bf16.xpose.msra.mxu0 0
  %214 = vmatprep.subr.bf16.mxu0 0
  %215 = vmatpush1.bf16.xpose.msra.mxu0 0
  %216 = vmatprep.subr.bf16.mxu0 0
  %217 = vmatpush1.bf16.xpose.msra.mxu0 0
  %218 = vmatprep.subr.bf16.mxu0 0
  %219 = vmatpush1.bf16.xpose.msra.mxu0 0
  %220 = vmatprep.subr.bf16.mxu0 0
  %221 = vmatpush1.bf16.xpose.msra.mxu0 0
  %222 = vmatprep.subr.bf16.mxu0 0
  %223 = vmatpush1.bf16.xpose.msra.mxu0 0
  %224 = vmatprep.subr.bf16.mxu0 0
  %225 = vmatpush1.bf16.xpose.msra.mxu0 0
  %226 = vmatprep.subr.bf16.mxu0 0
  %227 = vmatpush1.bf16.xpose.msra.mxu0 0
  %228 = vmatprep.subr.bf16.mxu0 0
  %229 = vmatpush1.bf16.xpose.msra.mxu0 0
  %230 = vmatprep.subr.bf16.mxu0 0
  %231 = vmatpush1.bf16.xpose.msra.mxu0 0
  %232 = vmatprep.subr.bf16.mxu0 0
  %233 = vmatpush1.bf16.xpose.msra.mxu0 0
  %234 = vmatprep.subr.bf16.mxu0 0
  %235 = vmatpush1.bf16.xpose.msra.mxu0 0
  %236 = vmatprep.subr.bf16.mxu0 0
  %237 = vmatpush1.bf16.xpose.msra.mxu0 0
  %238 = vmatprep.subr.bf16.mxu0 0
  %239 = vmatpush1.bf16.xpose.msra.mxu0 0
  %240 = vmatprep.mubr.bf16.mxu0 0
  %241 = vmatmul.mubr.bf16.gmra.mrb[0].mxu0 %v203
  %v242 = vpop.f32.mrb[0].mxu0
  %v243 = vadd.f32 %v200, %v242
  %v244 = vpop.f32.mrb[0].mxu0
  %v245 = vpop.f32.mrb[0].mxu0
  %v246 = vpop.f32.mrb[0].mxu0
  %247 = vdwg.mxu0
  %v248 = vsub.f32 0.0, %v243
  %v249 = vmul.f32 %v248, 1.442695
  %v250 = vpow.pop %v249
  %v251 = vadd.f32 %v250, 1.0
  %v252 = vrcp.pop %v251
  %vm253 = vcmask 122880
  %254 = vst.msk [vmem:[%s7] sm:$0x1] %vm253, %v252
  // Predicated region
  $region30: #{_dbn_forward_jit.1} parent=0 // pred_check
    _
  $region31: #{_dbn_forward_jit.1} parent=0 // pred_check_branch
    %256 = sbr.rel (0) target = $region33
  $region32: #{_dbn_forward_jit.1} parent=0 // pred_region
    _
  $region33: #{_dbn_forward_jit.1} parent=0 // pred_fallthru
    _
  // Predicated region
  $region34: #{_dbn_forward_jit.1} parent=0 // pred_check
    _
  $region35: #{_dbn_forward_jit.1} parent=0 // pred_check_branch
    %258 = sbr.rel (0) target = $region37
  $region36: #{_dbn_forward_jit.1} parent=0 // pred_region
    _
  $region37: #{_dbn_forward_jit.1} parent=0 // pred_fallthru
    _

// kernel: _dbn_forward_jit.1
$region0: #{_dbn_forward_jit.1}
  #allocation0 [shape = 'u32[]', space=smem, size = 0x4, offset = 0x4, fixed_abs, tag = 'smem constant byte address 0x4 - core index']
  #allocation1 [shape = 'u32[144,128]{1,0:T(1,128)}', space=vmem, size = 0x12000, scoped, tag = 'internal scratch']
  #allocation2 [shape = 'f32[1,1]{1,0:T(1,128)S(1)}', space=vmem, size = 0x200, scoped, tag = 'scoped memory for _dbn_forward_jit.1']
  %s0 = inlined_call_operand.vmem [shape: f32[16,32], index: 0, kind: input, shape index: {}]
  %s1 = inlined_call_operand.vmem [shape: bf16[32,32], index: 1, kind: input, shape index: {}]
  %s2 = inlined_call_operand.vmem [shape: f32[1,32], index: 2, kind: input, shape index: {}]
  %s3 = inlined_call_operand.vmem [shape: bf16[32,16], index: 3, kind: input, shape index: {}]
  %s4 = inlined_call_operand.vmem [shape: f32[1,16], index: 4, kind: input, shape index: {}]
  %s5 = inlined_call_operand.vmem [shape: f32[1,16], index: 5, kind: input, shape index: {}]
  %s6 = inlined_call_operand.<no memory space> [shape: f32[1,1], index: 6, kind: input, shape index: {}]
  %s7 = inlined_call_operand.vmem [shape: f32[1,16], index: 7, kind: output, shape index: {}]
  %s8 = sld [smem:[#allocation0]]
  $region38: #{_dbn_forward_jit.1} parent=0
    _
  %s10 = ssub.s32 1, %s8
  %s11 = scalar_select 0, %s10, %s8
  %v12 = vstv %s6
  %13 = vst [vmem:[#allocation2] sm:$0x1] %v12
  // Predicated region
  $region2: #{_dbn_forward_jit.1} parent=0 // pred_check
    _
  $region3: #{_dbn_forward_jit.1} parent=0 // pred_check_branch
    %15 = sbr.rel (0) target = $region5
  $region4: #{_dbn_forward_jit.1} parent=0 // pred_region
    _
  $region5: #{_dbn_forward_jit.1} parent=0 // pred_fallthru
    _
  // Predicated region
  $region6: #{_dbn_forward_jit.1} parent=0 // pred_check
    _
  $region7: #{_dbn_forward_jit.1} parent=0 // pred_check_branch
    %17 = sbr.rel (0) target = $region9
  $region8: #{_dbn_forward_jit.1} parent=0 // pred_region
    _
  $region9: #{_dbn_forward_jit.1} parent=0 // pred_fallthru
    _
  // Predicated region
  $region10: #{_dbn_forward_jit.1} parent=0 // pred_check
    _
  $region11: #{_dbn_forward_jit.1} parent=0 // pred_check_branch
    %19 = sbr.rel (0) target = $region13
  $region12: #{_dbn_forward_jit.1} parent=0 // pred_region
    _
  $region13: #{_dbn_forward_jit.1} parent=0 // pred_fallthru
    _
  // Predicated region
  $region14: #{_dbn_forward_jit.1} parent=0 // pred_check
    _
  $region15: #{_dbn_forward_jit.1} parent=0 // pred_check_branch
    %21 = sbr.rel (0) target = $region17
  $region16: #{_dbn_forward_jit.1} parent=0 // pred_region
    _
  $region17: #{_dbn_forward_jit.1} parent=0 // pred_fallthru
    _
  // Predicated region
  $region18: #{_dbn_forward_jit.1} parent=0 // pred_check
    _
  $region19: #{_dbn_forward_jit.1} parent=0 // pred_check_branch
    %23 = sbr.rel (0) target = $region21
  $region20: #{_dbn_forward_jit.1} parent=0 // pred_region
    _
  $region21: #{_dbn_forward_jit.1} parent=0 // pred_fallthru
    _
  // Predicated region
  $region22: #{_dbn_forward_jit.1} parent=0 // pred_check
    _
  $region23: #{_dbn_forward_jit.1} parent=0 // pred_check_branch
    %25 = sbr.rel (0) target = $region25
  $region24: #{_dbn_forward_jit.1} parent=0 // pred_region
    _
  $region25: #{_dbn_forward_jit.1} parent=0 // pred_fallthru
    _
  // Predicated region
  $region26: #{_dbn_forward_jit.1} parent=0 // pred_check
    _
  $region27: #{_dbn_forward_jit.1} parent=0 // pred_check_branch
    %27 = sbr.rel (0) target = $region29
  $region28: #{_dbn_forward_jit.1} parent=0 // pred_region
    _
  $region29: #{_dbn_forward_jit.1} parent=0 // pred_fallthru
    _
  %v29 = vld [vmem:[%s0] sm:$0xff]
  %v30 = vld [vmem:[%s0 + $0x8] sm:$0xff]
  %v31 = vpack.c.bf16 %v30, %v29
  %v32 = vld [vmem:[%s1] sm:$0xf]
  %v33 = vld [vmem:[%s1 + $0x4] sm:$0xf]
  %v34 = vld [vmem:[%s1 + $0x8] sm:$0xf]
  %v35 = vld [vmem:[%s1 + $0xc] sm:$0xf]
  %v36 = vld [vmem:[%s2] sm:$0x1]
  %v38 = vlaneseq
  %v39 = vshrl.u32 %v38, 7
  %v40 = vsub.s32 0, %v39
  %v41 = vrot.slane %v36, %v40
  %v47 = vunpack.c.l.b16 %v32
  %v48 = vunpack.c.l.b16 %v33
  %v49 = vunpack.c.l.b16 %v34
  %v50 = vunpack.c.l.b16 %v35
  %v51 = vpack.c.b16 %v48, %v47
  %v52 = vpack.c.b16 %v50, %v49
  %vm55 = vcmask 261120
  %v57 = vsel %vm55, %v31, 0
  %59 = vmatprep.subr.bf16.mxu0 0
  %60 = vmatpush1.bf16.msra.mxu0 %v51
  %61 = vmatprep.subr.bf16.mxu0 0
  %62 = vmatpush1.bf16.msra.mxu0 %v52
  %63 = vmatprep.subr.bf16.mxu0 0
  %64 = vmatpush1.bf16.msra.mxu0 0
  %65 = vmatprep.subr.bf16.mxu0 0
  %66 = vmatpush1.bf16.msra.mxu0 0
  %67 = vmatprep.subr.bf16.mxu0 0
  %68 = vmatpush1.bf16.msra.mxu0 0
  %69 = vmatprep.subr.bf16.mxu0 0
  %70 = vmatpush1.bf16.msra.mxu0 0
  %71 = vmatprep.subr.bf16.mxu0 0
  %72 = vmatpush1.bf16.msra.mxu0 0
  %73 = vmatprep.subr.bf16.mxu0 0
  %74 = vmatpush1.bf16.msra.mxu0 0
  %75 = vmatprep.subr.bf16.mxu0 0
  %76 = vmatpush1.bf16.msra.mxu0 0
  %77 = vmatprep.subr.bf16.mxu0 0
  %78 = vmatpush1.bf16.msra.mxu0 0
  %79 = vmatprep.subr.bf16.mxu0 0
  %80 = vmatpush1.bf16.msra.mxu0 0
  %81 = vmatprep.subr.bf16.mxu0 0
  %82 = vmatpush1.bf16.msra.mxu0 0
  %83 = vmatprep.subr.bf16.mxu0 0
  %84 = vmatpush1.bf16.msra.mxu0 0
  %85 = vmatprep.subr.bf16.mxu0 0
  %86 = vmatpush1.bf16.msra.mxu0 0
  %87 = vmatprep.subr.bf16.mxu0 0
  %88 = vmatpush1.bf16.msra.mxu0 0
  %89 = vmatprep.subr.bf16.mxu0 0
  %90 = vmatpush1.bf16.msra.mxu0 0
  %91 = vmatprep.mubr.bf16.mxu0 0
  %92 = vmatmul.mubr.bf16.gmra.mrb[0].mxu0 %v57
  %v93 = vpop.f32.mrb[0].mxu0
  %v94 = vadd.f32 %v41, %v93
  %v95 = vpop.f32.mrb[0].mxu0
  %v96 = vpop.f32.mrb[0].mxu0
  %v97 = vadd.f32 %v41, %v96
  %v98 = vpop.f32.mrb[0].mxu0
  %99 = vdwg.mxu0
  %v100 = vsub.f32 0.0, %v94
  %v101 = vsub.f32 0.0, %v97
  %v102 = vmul.f32 %v100, 1.442695
  %v103 = vpow.pop %v102
  %v104 = vmul.f32 %v101, 1.442695
  %v105 = vpow.pop %v104
  %v106 = vadd.f32 %v103, 1.0
  %v107 = vadd.f32 %v105, 1.0
  %v108 = vrcp.pop %v106
  %v109 = vrcp.pop %v107
  %v110 = vpack.c.bf16 %v109, %v108
  %v111 = vld [vmem:[%s3] sm:$0xf]
  %v112 = vld [vmem:[%s3 + $0x4] sm:$0xf]
  %v113 = vld [vmem:[%s3 + $0x8] sm:$0xf]
  %v114 = vld [vmem:[%s3 + $0xc] sm:$0xf]
  %v115 = vld [vmem:[%s4] sm:$0x1]
  %v117 = vlaneseq
  %v118 = vshrl.u32 %v117, 7
  %v119 = vsub.s32 0, %v118
  %v120 = vrot.slane %v115, %v119
  %v126 = vunpack.c.l.b16 %v111
  %v127 = vunpack.c.l.b16 %v112
  %v128 = vunpack.c.l.b16 %v113
  %v129 = vunpack.c.l.b16 %v114
  %v130 = vpack.c.b16 %v127, %v126
  %v131 = vpack.c.b16 %v129, %v128
  %v135 = vsel %vm55, %v110, 0
  %137 = vmatprep.subr.bf16.mxu0 0
  %138 = vmatpush1.bf16.msra.mxu0 %v130
  %139 = vmatprep.subr.bf16.mxu0 0
  %140 = vmatpush1.bf16.msra.mxu0 %v131
  %141 = vmatprep.subr.bf16.mxu0 0
  %142 = vmatpush1.bf16.msra.mxu0 0
  %143 = vmatprep.subr.bf16.mxu0 0
  %144 = vmatpush1.bf16.msra.mxu0 0
  %145 = vmatprep.subr.bf16.mxu0 0
  %146 = vmatpush1.bf16.msra.mxu0 0
  %147 = vmatprep.subr.bf16.mxu0 0
  %148 = vmatpush1.bf16.msra.mxu0 0
  %149 = vmatprep.subr.bf16.mxu0 0
  %150 = vmatpush1.bf16.msra.mxu0 0
  %151 = vmatprep.subr.bf16.mxu0 0
  %152 = vmatpush1.bf16.msra.mxu0 0
  %153 = vmatprep.subr.bf16.mxu0 0
  %154 = vmatpush1.bf16.msra.mxu0 0
  %155 = vmatprep.subr.bf16.mxu0 0
  %156 = vmatpush1.bf16.msra.mxu0 0
  %157 = vmatprep.subr.bf16.mxu0 0
  %158 = vmatpush1.bf16.msra.mxu0 0
  %159 = vmatprep.subr.bf16.mxu0 0
  %160 = vmatpush1.bf16.msra.mxu0 0
  %161 = vmatprep.subr.bf16.mxu0 0
  %162 = vmatpush1.bf16.msra.mxu0 0
  %163 = vmatprep.subr.bf16.mxu0 0
  %164 = vmatpush1.bf16.msra.mxu0 0
  %165 = vmatprep.subr.bf16.mxu0 0
  %166 = vmatpush1.bf16.msra.mxu0 0
  %167 = vmatprep.subr.bf16.mxu0 0
  %168 = vmatpush1.bf16.msra.mxu0 0
  %169 = vmatprep.mubr.bf16.mxu0 0
  %170 = vmatmul.mubr.bf16.gmra.mrb[0].mxu0 %v135
  %v171 = vpop.f32.mrb[0].mxu0
  %v172 = vadd.f32 %v120, %v171
  %v173 = vpop.f32.mrb[0].mxu0
  %v174 = vpop.f32.mrb[0].mxu0
  %v175 = vadd.f32 %v120, %v174
  %v176 = vpop.f32.mrb[0].mxu0
  %177 = vdwg.mxu0
  %v178 = vsub.f32 0.0, %v172
  %v179 = vsub.f32 0.0, %v175
  %v180 = vmul.f32 %v178, 1.442695
  %v181 = vpow.pop %v180
  %v182 = vmul.f32 %v179, 1.442695
  %v183 = vpow.pop %v182
  %v184 = vadd.f32 %v181, 1.0
  %v185 = vadd.f32 %v183, 1.0
  %v186 = vrcp.pop %v184
  %v187 = vrcp.pop %v185
  %v188 = vpack.c.bf16 %v187, %v186
  %v189 = vld [vmem:[%s5] sm:$0x1]
  %v190 = vld [vmem:[#allocation2] sm:$0x1]
  %v191 = vpack.c.bf16 %v189, %v189
  %193 = vset.pattern.permute.xlu0 0
  %194 = vperm.xlu0 %193, %v190
  %v195 = vpop.permute.xlu0 %194
  %v197 = vlaneseq
  %v198 = vshrl.u32 %v197, 7
  %v199 = vsub.s32 0, %v198
  %v200 = vrot.slane %v195, %v199
  %vm201 = vcmask 130048
  %v203 = vsel %vm201, %v191, 0
  %v206 = vsel %vm201, %v188, 0
  %208 = vmatprep.subr.bf16.mxu0 0
  %209 = vmatpush1.bf16.xpose.msra.mxu0 %v206
  %210 = vmatprep.subr.bf16.mxu0 0
  %211 = vmatpush1.bf16.xpose.msra.mxu0 0
  %212 = vmatprep.subr.bf16.mxu0 0
  %213 = vmatpush1.bf16.xpose.msra.mxu0 0
  %214 = vmatprep.subr.bf16.mxu0 0
  %215 = vmatpush1.bf16.xpose.msra.mxu0 0
  %216 = vmatprep.subr.bf16.mxu0 0
  %217 = vmatpush1.bf16.xpose.msra.mxu0 0
  %218 = vmatprep.subr.bf16.mxu0 0
  %219 = vmatpush1.bf16.xpose.msra.mxu0 0
  %220 = vmatprep.subr.bf16.mxu0 0
  %221 = vmatpush1.bf16.xpose.msra.mxu0 0
  %222 = vmatprep.subr.bf16.mxu0 0
  %223 = vmatpush1.bf16.xpose.msra.mxu0 0
  %224 = vmatprep.subr.bf16.mxu0 0
  %225 = vmatpush1.bf16.xpose.msra.mxu0 0
  %226 = vmatprep.subr.bf16.mxu0 0
  %227 = vmatpush1.bf16.xpose.msra.mxu0 0
  %228 = vmatprep.subr.bf16.mxu0 0
  %229 = vmatpush1.bf16.xpose.msra.mxu0 0
  %230 = vmatprep.subr.bf16.mxu0 0
  %231 = vmatpush1.bf16.xpose.msra.mxu0 0
  %232 = vmatprep.subr.bf16.mxu0 0
  %233 = vmatpush1.bf16.xpose.msra.mxu0 0
  %234 = vmatprep.subr.bf16.mxu0 0
  %235 = vmatpush1.bf16.xpose.msra.mxu0 0
  %236 = vmatprep.subr.bf16.mxu0 0
  %237 = vmatpush1.bf16.xpose.msra.mxu0 0
  %238 = vmatprep.subr.bf16.mxu0 0
  %239 = vmatpush1.bf16.xpose.msra.mxu0 0
  %240 = vmatprep.mubr.bf16.mxu0 0
  %241 = vmatmul.mubr.bf16.gmra.mrb[0].mxu0 %v203
  %v242 = vpop.f32.mrb[0].mxu0
  %v243 = vadd.f32 %v200, %v242
  %v244 = vpop.f32.mrb[0].mxu0
  %v245 = vpop.f32.mrb[0].mxu0
  %v246 = vpop.f32.mrb[0].mxu0
  %247 = vdwg.mxu0
  %v248 = vsub.f32 0.0, %v243
  %v249 = vmul.f32 %v248, 1.442695
  %v250 = vpow.pop %v249
  %v251 = vadd.f32 %v250, 1.0
  %v252 = vrcp.pop %v251
  %vm253 = vcmask 122880
  %254 = vst.msk [vmem:[%s7] sm:$0x1] %vm253, %v252
  // Predicated region
  $region30: #{_dbn_forward_jit.1} parent=0 // pred_check
    _
  $region31: #{_dbn_forward_jit.1} parent=0 // pred_check_branch
    %256 = sbr.rel (0) target = $region33
  $region32: #{_dbn_forward_jit.1} parent=0 // pred_region
    _
  $region33: #{_dbn_forward_jit.1} parent=0 // pred_fallthru
    _
  // Predicated region
  $region34: #{_dbn_forward_jit.1} parent=0 // pred_check
    _
  $region35: #{_dbn_forward_jit.1} parent=0 // pred_check_branch
    %258 = sbr.rel (0) target = $region37
  $region36: #{_dbn_forward_jit.1} parent=0 // pred_region
    _
  $region37: #{_dbn_forward_jit.1} parent=0 // pred_fallthru
    _

</llo_original>
